<compile_context>
chip_gen: v7x
topology: tpu7x:2x2x1
jax: 0.10.0
libtpu: 0.0.40
codegen_flags: <defaults>
</compile_context>

<pallas_src>
import jax
import jax.numpy as jnp
from jax.experimental import pallas as pl
from jax.experimental.pallas import tpu as pltpu

LANE = 128
_PAYLOAD_TARGET_BYTES = 4 * 1024 * 1024   # per-grid-step x DMA payload target (~4 MiB)
_SMEM_W_MAX_FEATURES = 32                 # unrolled-SMEM-weight path threshold


def _round_up(v, m):
    return ((v + m - 1) // m) * m


def _vmem_capacity_bytes():
    try:
        info = pltpu.get_tpu_info()
        cap = getattr(info, "vmem_capacity_bytes", None)
        if cap:
            return int(cap)
    except Exception:
        pass
    return 64 * 1024 * 1024   # conservative default (v7x per-TensorCore VMEM)


def _pick_batch_tile(batch, n_feature, itemsize=4):
    """Generation-aware batch tile: big enough to amortize per-step pipeline overhead,
    small enough that the double-buffered blocks fit comfortably in VMEM."""
    vmem_budget = _vmem_capacity_bytes() // 4                  # headroom for both buffers
    bytes_per_lane = 2 * itemsize * (n_feature + 1)            # dbl-buffered x col + out lane
    tb_vmem = max(LANE, vmem_budget // bytes_per_lane)
    tb_payload = max(LANE, _PAYLOAD_TARGET_BYTES // (n_feature * itemsize))
    tb = min(tb_vmem, tb_payload)
    tb = max(LANE, (tb // LANE) * LANE)
    # Never wider than the lane-rounded batch.
    tb = min(tb, _round_up(batch, LANE))
    # Keep >= 2 grid steps on non-tiny batches so the "parallel" axis can use both
    # TensorCores on v7x (modest win; HBM is shared, but avoids a 2x idle-core cliff).
    if batch > 8 * LANE and pl.cdiv(batch, tb) < 2:
        tb = max(LANE, _round_up(pl.cdiv(batch, 2), LANE))
    return tb


def _linear_kernel_smem_w(x_ref, w_ref, b_ref, o_ref):
    # x_ref: (F, TB) lane-major batch tile (VMEM)
    # w_ref: (F,)    weights (SMEM scalars)
    # b_ref: (1,)    bias (SMEM scalar)
    # o_ref: (1, TB) lane-dense output tile (VMEM)
    x = x_ref[...].astype(jnp.float32)                     # (F, TB)
    n_feature = x_ref.shape[0]                             # static at trace time
    acc = x[0:1, :] * w_ref[0]                             # scalar FMAs on (1, TB) vregs
    for k in range(1, n_feature):
        acc = acc + x[k:k + 1, :] * w_ref[k]
    o_ref[...] = (acc + b_ref[0]).astype(o_ref.dtype)


def _linear_kernel_vmem_w(x_ref, w_ref, b_ref, o_ref):
    # Fallback for larger n_feature: weight column in VMEM, sublane reduce.
    # x_ref: (F, TB) VMEM, w_ref: (F, 1) VMEM, b_ref: (1,) SMEM, o_ref: (1, TB) VMEM
    x = x_ref[...].astype(jnp.float32)
    w = w_ref[...].astype(jnp.float32)                     # (F, 1) -> broadcast over lanes
    y = jnp.sum(x * w, axis=0, keepdims=True)              # VPU mul + sublane reduce -> (1, TB)
    o_ref[...] = (y + b_ref[0]).astype(o_ref.dtype)


def linear_net_forward(x, w, b, *, feature_major=False):
    """Forward pass of LinearNet (nn.Linear(n_feature, 1)).

    x: (batch, n_feature) float32, or (n_feature, batch) if feature_major=True
       (pass feature-major input to skip the wrapper transpose's extra HBM pass).
    w: (1, n_feature) float32   (torch nn.Linear.weight layout)
    b: (1,)           float32   (torch nn.Linear.bias layout)
    returns: (batch, 1) in x.dtype
    """
    if feature_major:
        n_feature, batch = x.shape
        x_t = x
    else:
        batch, n_feature = x.shape
        # One extra HBM pass; avoid by producing x feature-major upstream if possible.
        x_t = jnp.transpose(x)                             # (F, batch)

    itemsize = jnp.dtype(x.dtype).itemsize
    b1 = b.reshape(1).astype(jnp.float32)

    tb = _pick_batch_tile(batch, n_feature, itemsize)
    grid = (pl.cdiv(batch, tb),)                           # ragged last block; no jnp.pad

    if n_feature <= _SMEM_W_MAX_FEATURES:
        kernel = _linear_kernel_smem_w
        w_arg = w.reshape(n_feature).astype(jnp.float32)                  # (F,) in SMEM
        w_spec = pl.BlockSpec(memory_space=pltpu.MemorySpace.SMEM)
    else:
        # TODO(synk): for very large n_feature, add a trailing "arbitrary" grid axis over F
        # with a (1, tb) f32 VMEM scratch accumulator instead of one full-F column per step.
        kernel = _linear_kernel_vmem_w
        w_arg = jnp.transpose(w.reshape(1, n_feature))                    # (F, 1) in VMEM
        w_spec = pl.BlockSpec((n_feature, 1), lambda i: (0, 0))

    # Raise the scoped-VMEM limit to cover the double-buffered blocks (v5e default 16 MiB,
    # v6e/v7x 32 MiB), but keep headroom under the physical capacity (64 MiB on v7x).
    x_block_bytes = n_feature * tb * itemsize
    out_block_bytes = tb * itemsize
    vmem_limit = 2 * (x_block_bytes + out_block_bytes) + (4 << 20)
    vmem_limit = max(vmem_limit, 32 << 20)
    vmem_limit = min(vmem_limit, _vmem_capacity_bytes() * 3 // 4)

    out = pl.pallas_call(
        kernel,
        out_shape=jax.ShapeDtypeStruct((1, batch), x.dtype),
        grid=grid,
        in_specs=[
            pl.BlockSpec((n_feature, tb), lambda i: (0, i)),       # lane-dense x tile
            w_spec,
            pl.BlockSpec(memory_space=pltpu.MemorySpace.SMEM),     # bias scalar in SMEM
        ],
        out_specs=pl.BlockSpec((1, tb), lambda i: (0, i)),         # lane-dense output slab
        compiler_params=pltpu.CompilerParams(
            dimension_semantics=("parallel",),
            vmem_limit_bytes=int(vmem_limit),
        ),
        cost_estimate=pl.CostEstimate(
            flops=2 * batch * n_feature,
            transcendentals=0,
            bytes_accessed=itemsize * (batch * n_feature + batch) + 4 * (n_feature + 1),
        ),
    )(x_t, w_arg, b1)

    # (1, batch) -> (batch, 1): same row-major order, cheap reshape.
    return out.reshape(batch, 1)


if __name__ == "__main__":
    key = jax.random.PRNGKey(0)

    def make_case(k, batch, n_feature):
        kx, kw = jax.random.split(k)
        x = jax.random.normal(kx, (batch, n_feature), dtype=jnp.float32)
        w = jax.random.normal(kw, (1, n_feature), dtype=jnp.float32) * 0.1
        b = jnp.full((1,), 0.5, dtype=jnp.float32)
        return x, w, b

    k1, k2, k3, k4 = jax.random.split(key, 4)
    cases = [
        make_case(k1, 8, 2),      # classic tiny linreg shape; single ragged block
        make_case(k2, 300, 3),    # non-multiple-of-128 batch, no wrapper pad
        make_case(k3, 1200, 4),   # >= 2 grid steps (TC-parallel split), ragged last block
        make_case(k4, 256, 64),   # larger-F fallback path (VMEM weight column)
    ]

    for x, w, b in cases:
        y = linear_net_forward(x, w, b)
        jax.block_until_ready(y)
        y_ref = x @ w.T + b
        assert y.shape == (x.shape[0], 1)
        assert jnp.allclose(y, y_ref, atol=1e-4, rtol=1e-4), "mismatch vs reference"

    # Feature-major input path (no wrapper transpose -> zero extra HBM passes over x).
    x, w, b = cases[2]
    y = linear_net_forward(jnp.transpose(x), w, b, feature_major=True)
    jax.block_until_ready(y)
    assert jnp.allclose(y, x @ w.T + b, atol=1e-4, rtol=1e-4), "feature-major mismatch"

    print("KERNEL_OK")
</pallas_src>

<mosaic_0001>
module attributes {stable_mosaic.version = 11 : i64} {
  func.func @_linear_kernel_smem_w(%arg0: i32, %arg1: memref<2x128xf32, #tpu.memory_space<vmem>>, %arg2: memref<2xf32, #tpu.memory_space<smem>>, %arg3: memref<1xf32, #tpu.memory_space<smem>>, %arg4: memref<1x128xf32, #tpu.memory_space<vmem>>) attributes {dimension_semantics = [#tpu.dimension_semantics<parallel>], iteration_bounds = array<i64: 1>, scalar_prefetch = 0 : i64, scratch_operands = 0 : i64, tpu.core_type = #tpu.core_type<tc>, window_params = [{transform_indices = @transform_0, window_bounds = array<i64: 2, 128>}, {transform_indices = @transform_1, window_bounds = array<i64: 2>}, {transform_indices = @transform_2, window_bounds = array<i64: 1>}, {transform_indices = @transform_3, window_bounds = array<i64: 1, 128>}]} {
    %c0 = arith.constant 0 : index
    %c0_0 = arith.constant 0 : index
    %0 = vector.load %arg1[%c0, %c0_0] : memref<2x128xf32, #tpu.memory_space<vmem>>, vector<2x128xf32>
    %1 = vector.extract_strided_slice %0 {offsets = [0, 0], sizes = [1, 128], strides = [1, 1]} : vector<2x128xf32> to vector<1x128xf32>
    %c0_1 = arith.constant 0 : index
    %2 = memref.load %arg2[%c0_1] : memref<2xf32, #tpu.memory_space<smem>>
    %3 = vector.broadcast %2 : f32 to vector<1x128xf32>
    %4 = arith.mulf %1, %3 : vector<1x128xf32>
    %5 = vector.extract_strided_slice %0 {offsets = [1, 0], sizes = [1, 128], strides = [1, 1]} : vector<2x128xf32> to vector<1x128xf32>
    %c1 = arith.constant 1 : index
    %6 = memref.load %arg2[%c1] : memref<2xf32, #tpu.memory_space<smem>>
    %7 = vector.broadcast %6 : f32 to vector<1x128xf32>
    %8 = arith.mulf %5, %7 : vector<1x128xf32>
    %9 = arith.addf %4, %8 : vector<1x128xf32>
    %c0_2 = arith.constant 0 : index
    %10 = memref.load %arg3[%c0_2] : memref<1xf32, #tpu.memory_space<smem>>
    %11 = vector.broadcast %10 : f32 to vector<1x128xf32>
    %12 = arith.addf %9, %11 : vector<1x128xf32>
    %c0_3 = arith.constant 0 : index
    %c0_4 = arith.constant 0 : index
    %13 = vector.load %arg4[%c0_3, %c0_4] : memref<1x128xf32, #tpu.memory_space<vmem>>, vector<1x128xf32>
    tpu.vector_store %arg4[%c0_3, %c0_4], %12 {strides = array<i32>} : memref<1x128xf32, #tpu.memory_space<vmem>>, vector<1x128xf32>,
    return
  }
  func.func @transform_0(%arg0: i32) -> (i32, i32) {
    %c0_i32 = arith.constant 0 : i32
    %c0_i32_0 = arith.constant 0 : i32
    return %c0_i32, %arg0 : i32, i32
  }
  func.func @transform_1(%arg0: i32) -> i32 {
    %c0_i32 = arith.constant 0 : i32
    %c0_i32_0 = arith.constant 0 : i32
    return %c0_i32 : i32
  }
  func.func @transform_2(%arg0: i32) -> i32 {
    %c0_i32 = arith.constant 0 : i32
    %c0_i32_0 = arith.constant 0 : i32
    return %c0_i32 : i32
  }
  func.func @transform_3(%arg0: i32) -> (i32, i32) {
    %c0_i32 = arith.constant 0 : i32
    %c0_i32_0 = arith.constant 0 : i32
    return %c0_i32, %arg0 : i32, i32
  }
}

</mosaic_0001>

<llo_original>
// kernel: tpu_custom_call.1
$region0: #{tpu_custom_call.1}
  #allocation0 [shape = 'u32[]', space=smem, size = 0x4, offset = 0x4, fixed_abs, tag = 'smem constant byte address 0x4 - core index']
  #allocation1 [shape = 'u32[144,128]{1,0:T(1,128)}', space=vmem, size = 0x12000, scoped, tag = 'internal scratch']
  #allocation2 [shape = 'f32[1]{0:T(128)S(6)}', space=smem, size = 0x200, scoped, tag = 'scoped memory for tpu_custom_call.1']
  %s0 = inlined_call_operand.vmem [shape: f32[2,8], index: 0, kind: input, shape index: {}]
  %s1 = inlined_call_operand.vmem [shape: f32[2], index: 1, kind: input, shape index: {}]
  %s2 = inlined_call_operand.<no memory space> [shape: f32[1], index: 2, kind: input, shape index: {}]
  %s3 = inlined_call_operand.hbm [shape: f32[1,8], index: 3, kind: output, shape index: {}]
  %s4 = sld [smem:[#allocation0]]
  $region26: #{tpu_custom_call.1} parent=0
    _
  %s6 = ssub.s32 1, %s4
  %s7 = scalar_select 0, %s6, %s4
  %8 = sst [smem:[#allocation2]] %s2
  $region1: #{tpu_custom_call.1} parent=0
    #allocation3 [shape = 'u8[512]{0}', space=smem, size = 0x200, scoped, tag = 'input window, operand 1, single buffered']
    #allocation4 [shape = 's32[1]{0}', space=sflag, size = 0x4, scoped, tag = 'scoped memory for tpu_custom_call.1']
    #allocation5 [shape = 's32[1]{0}', space=sflag, size = 0x4, scoped, tag = 'scoped memory for tpu_custom_call.1']
    #allocation6 [shape = 'u8[512]{0}', space=vmem, size = 0x400, scoped, tag = 'output window, operand 0, single buffered']
    %9 = vsyncpa [#allocation5], 0
    %10 = vsyncpa [#allocation4], 0
    // Predicated region
    $region2: #{tpu_custom_call.1} parent=1 // pred_check
      _
    $region3: #{tpu_custom_call.1} parent=1 // pred_check_branch
      %12 = sbr.rel (0) target = $region5
    $region4: #{tpu_custom_call.1} parent=1 // pred_region
      _
    $region5: #{tpu_custom_call.1} parent=1 // pred_fallthru
      _
    // Predicated region
    $region6: #{tpu_custom_call.1} parent=1 // pred_check
      _
    $region7: #{tpu_custom_call.1} parent=1 // pred_check_branch
      %14 = sbr.rel (0) target = $region9
    $region8: #{tpu_custom_call.1} parent=1 // pred_region
      %s16 = ssub.s32 16, 16
      %17 = vsyncadd [#allocation5], %s16
      %s19 = sshll.u32 %s1, 4
      %s20 = int_to_ptr.vmem [resolvable:$true] %s19
      %22 = dma.vmem_to_smem %s20, 16, [#allocation3], [#allocation5]
    $region9: #{tpu_custom_call.1} parent=1 // pred_fallthru
      _
    // Predicated region
    $region10: #{tpu_custom_call.1} parent=1 // pred_check
      _
    $region11: #{tpu_custom_call.1} parent=1 // pred_check_branch
      %24 = sbr.rel (0) target = $region13
    $region12: #{tpu_custom_call.1} parent=1 // pred_region
      _
    $region13: #{tpu_custom_call.1} parent=1 // pred_fallthru
      _
    // Predicated region
    $region14: #{tpu_custom_call.1} parent=1 // pred_check
      _
    $region15: #{tpu_custom_call.1} parent=1 // pred_check_branch
      %26 = sbr.rel (0) target = $region17
    $region16: #{tpu_custom_call.1} parent=1 // pred_region
      %27 = dma.done [#allocation5], 16
    $region17: #{tpu_custom_call.1} parent=1 // pred_fallthru
      _
    %28 = sfence
    %v29 = vld [vmem:[%s0] sm:$0x3]
    %s30 = sld [smem:[#allocation3]]
    %v31 = vstv %s30
    %v32 = vmul.f32 %v29, %v31
    %s33 = sld [smem:[#allocation3 + $0x1]]
    %v34 = vstv %s33
    %v35 = vmul.f32 %v29, %v34
    %v37 = vrot.slane %v35, 1
    %v39 = vadd.f32 %v32, %v37
    %s40 = sld [smem:[#allocation2]]
    %v41 = vstv %s40
    %v42 = vadd.f32 %v39, %v41
    %43 = vst [vmem:[#allocation6] sm:$0x1] %v42
    // Predicated region
    $region18: #{tpu_custom_call.1} parent=1 // pred_check
      _
    $region19: #{tpu_custom_call.1} parent=1 // pred_check_branch
      %45 = sbr.rel (0) target = $region21
    $region20: #{tpu_custom_call.1} parent=1 // pred_region
      %s47 = ssub.s32 16, 16
      %48 = vsyncadd [#allocation4], %s47
      %s50 = sshll.u32 [#allocation6], 4
      %s51 = int_to_ptr.vmem [resolvable:$true] %s50
      %53 = dma.vmem_to_hbm [thread:$0]  %s51, 16, %s3, [#allocation4]
    $region21: #{tpu_custom_call.1} parent=1 // pred_fallthru
      _
    // Predicated region
    $region22: #{tpu_custom_call.1} parent=1 // pred_check
      _
    $region23: #{tpu_custom_call.1} parent=1 // pred_check_branch
      %55 = sbr.rel (0) target = $region25
    $region24: #{tpu_custom_call.1} parent=1 // pred_region
      %56 = dma.done [#allocation4], 16
    $region25: #{tpu_custom_call.1} parent=1 // pred_fallthru
      _
    %57 = vsyncpa [#allocation4], 1
    %58 = vsyncpa [#allocation5], 1

</llo_original>
